<compile_context>
chip_gen: v5e
topology: v5e:2x2
jax: 0.10.0
libtpu: 0.0.40
codegen_flags: <defaults>
</compile_context>

<pallas_src>
import jax
import jax.numpy as jnp
from jax.experimental import pallas as pl
from jax.experimental.pallas import tpu as pltpu


def _round_up(x, m):
    return ((x + m - 1) // m) * m


def leconv_kernel(adj_ref, emb_ref, nodes_ref, deg_ref, w_ref, w12_ref, b12_ref,
                  out_ref):
    """Grid = (m_block, n_block); n_block is the reduction ("arbitrary") axis.

    out_ref's block index is invariant over the n axis, so the f32 output tile
    stays resident in VMEM and doubles as the accumulator (no scratch needed).
    """
    k = pl.program_id(1)

    @pl.when(k == 0)
    def _():
        out_ref[...] = jnp.zeros_like(out_ref)

    # xw tile = emb_tile @ W                 [tk, C_out_pad]
    #   (recompute costs ~C_in/tm extra MXU flops — free while HBM-bound on
    #    adj; precompute XW in the wrapper instead once C_in >= C_out_pad.)
    # out    += adj_tile @ xw                [tm, C_out_pad]
    #   adj arrives as bf16 (exact small-integer edge counts) and is cast back
    #   to f32 so the accumulation matches the f32 reference bit-for-bit.
    xw = jnp.dot(emb_ref[...], w_ref[...], preferred_element_type=jnp.float32)
    adj = adj_ref[...].astype(jnp.float32)
    out_ref[...] += jnp.dot(adj, xw, preferred_element_type=jnp.float32)

    @pl.when(k == pl.num_programs(1) - 1)
    def _():
        # Fused lin1/lin2: nodes @ [W1.T | W2.T] + [b1 | b2], split at the
        # lane-aligned C_out_pad boundary (vreg-aligned, no relayout).
        h12 = jnp.dot(nodes_ref[...], w12_ref[...],
                      preferred_element_type=jnp.float32) + b12_ref[...]
        c = out_ref.shape[-1]
        out_ref[...] += deg_ref[...] * h12[:, :c] + h12[:, c:]


def leconv_forward(all_community_embeddings, valid_nodes, index, index1, params,
                   edge_weight=None, num_out_nodes=None, tm=256, tk=1024):
    """Pallas LEConv forward.

    params: dict with 'weight' [Cin,Cout], 'w1','w2' [Cout,Cin], 'b1','b2' [Cout]
    """
    x = all_community_embeddings
    N, C_in = x.shape
    C_out = params["weight"].shape[1]
    M = int(valid_nodes.shape[0]) if num_out_nodes is None else int(num_out_nodes)
    E = index1.shape[0]

    if edge_weight is None:
        edge_weight = jnp.ones((E,), dtype=x.dtype)

    f32 = jnp.float32

    # ---- padded / tiled sizes ------------------------------------------------
    tm = min(tm, _round_up(M, 8))            # sublane-aligned row tile
    # v7x shards the "parallel" row axis across its 2 TensorCores: make sure
    # there are >= 2 m-blocks whenever M allows it (no-op on v5e/v6e).
    if _round_up(M, tm) // tm < 2 and M > 8:
        tm = _round_up((M + 1) // 2, 8)
    tk = min(tk, _round_up(N, 128))          # lane-aligned reduction tile
    M_pad = _round_up(M, tm)
    N_pad = _round_up(N, tk)
    C_out_pad = _round_up(C_out, 128)        # lane-dense output / accumulator

    # ---- wrapper-side glue (cheap O(E) / O(M*C_in) ops) ----------------------
    # Dense adjacency holds *unweighted* edge multiplicities: the reference
    # aggregation scatter_add(xw[index], index1) does NOT use edge_weight.
    # Built directly in bf16 (exact for small integer counts) to halve the
    # dominant HBM stream into the kernel.
    adj = jnp.zeros((M_pad, N_pad), dtype=jnp.bfloat16).at[index1, index].add(
        jnp.ones((E,), dtype=jnp.bfloat16))

    # deg = scatter_add(edge_weight, index1): O(E) segment sum in the wrapper.
    deg = jax.ops.segment_sum(edge_weight.astype(f32), index1,
                              num_segments=M_pad).reshape(M_pad, 1)

    # nodes = x[valid_nodes]: plain gather (no one-hot matmul).
    nodes = jnp.zeros((M_pad, C_in), dtype=f32).at[:M].set(
        x[valid_nodes].astype(f32))

    emb = jnp.zeros((N_pad, C_in), dtype=f32).at[:N].set(x.astype(f32))

    # Pre-transposed, fused, lane-padded weights / biases.
    w = jnp.zeros((C_in, C_out_pad), dtype=f32).at[:, :C_out].set(
        params["weight"].astype(f32))
    w12 = jnp.zeros((C_in, 2 * C_out_pad), dtype=f32)
    w12 = w12.at[:, :C_out].set(params["w1"].T.astype(f32))
    w12 = w12.at[:, C_out_pad:C_out_pad + C_out].set(params["w2"].T.astype(f32))
    b12 = jnp.zeros((1, 2 * C_out_pad), dtype=f32)
    b12 = b12.at[:, :C_out].set(params["b1"].reshape(1, C_out).astype(f32))
    b12 = b12.at[:, C_out_pad:C_out_pad + C_out].set(
        params["b2"].reshape(1, C_out).astype(f32))

    grid = (M_pad // tm, N_pad // tk)

    out_pad = pl.pallas_call(
        leconv_kernel,
        out_shape=jax.ShapeDtypeStruct((M_pad, C_out_pad), f32),
        grid_spec=pltpu.PrefetchScalarGridSpec(
            num_scalar_prefetch=0,
            grid=grid,
            in_specs=[
                pl.BlockSpec((tm, tk), lambda i, k: (i, k)),                # adj (bf16)
                pl.BlockSpec((tk, C_in), lambda i, k: (k, 0)),              # emb
                pl.BlockSpec((tm, C_in), lambda i, k: (i, 0)),              # nodes
                pl.BlockSpec((tm, 1), lambda i, k: (i, 0)),                 # deg
                pl.BlockSpec((C_in, C_out_pad), lambda i, k: (0, 0)),       # W
                pl.BlockSpec((C_in, 2 * C_out_pad), lambda i, k: (0, 0)),   # W12
                pl.BlockSpec((1, 2 * C_out_pad), lambda i, k: (0, 0)),      # b12
            ],
            out_specs=pl.BlockSpec((tm, C_out_pad), lambda i, k: (i, 0)),
        ),
        compiler_params=pltpu.CompilerParams(
            dimension_semantics=("parallel", "arbitrary"),
            vmem_limit_bytes=32 * 1024 * 1024,
        ),
    )(adj, emb, nodes, deg, w, w12, b12)

    return out_pad[:M, :C_out].astype(x.dtype)


def leconv_reference(x, valid_nodes, index, index1, params, M, edge_weight=None):
    """Pure-JAX reference mirroring the PyTorch forward."""
    E = index1.shape[0]
    if edge_weight is None:
        edge_weight = jnp.ones((E,), dtype=x.dtype)
    xw = x @ params["weight"]
    deg = jax.ops.segment_sum(edge_weight, index1, num_segments=M)
    aggr = jax.ops.segment_sum(xw[index], index1, num_segments=M)
    nodes = x[valid_nodes]
    lin1 = nodes @ params["w1"].T + params["b1"]
    lin2 = nodes @ params["w2"].T + params["b2"]
    return deg[:, None] * lin1 + aggr + lin2


if __name__ == "__main__":
    key = jax.random.PRNGKey(0)
    (k_x, k_w, k_w1, k_b1, k_w2, k_b2,
     k_idx, k_idx1, k_valid, k_ew) = jax.random.split(key, 10)

    N, C_in, C_out = 384, 16, 32   # total community nodes, in/out channels
    M, E = 128, 1024               # valid (output) nodes, edges

    x = jax.random.normal(k_x, (N, C_in), dtype=jnp.float32)
    valid_nodes = jax.random.permutation(k_valid, N)[:M]
    index = jax.random.randint(k_idx, (E,), 0, N)    # edge sources (into N)
    index1 = jax.random.randint(k_idx1, (E,), 0, M)  # edge targets (into M)
    edge_weight = jax.random.uniform(k_ew, (E,), dtype=jnp.float32)

    params = {
        "weight": jax.random.normal(k_w, (C_in, C_out), dtype=jnp.float32) * 0.1,
        "w1": jax.random.normal(k_w1, (C_out, C_in), dtype=jnp.float32) * 0.1,
        "b1": jax.random.normal(k_b1, (C_out,), dtype=jnp.float32) * 0.1,
        "w2": jax.random.normal(k_w2, (C_out, C_in), dtype=jnp.float32) * 0.1,
        "b2": jax.random.normal(k_b2, (C_out,), dtype=jnp.float32) * 0.1,
    }

    # Small tiles so this demo exercises a real (2 x 3) grid at these shapes.
    out = leconv_forward(x, valid_nodes, index, index1, params,
                         edge_weight=edge_weight, tm=64, tk=128)
    out = jax.block_until_ready(out)

    ref = leconv_reference(x, valid_nodes, index, index1, params, M,
                           edge_weight=edge_weight)
    assert out.shape == (M, C_out)
    assert jnp.allclose(out, ref, atol=1e-3, rtol=1e-3), "mismatch vs reference"
    print("KERNEL_OK")
</pallas_src>

<mosaic_0001>
module attributes {stable_mosaic.version = 11 : i64} {
  func.func @leconv_kernel(%arg0: i32, %arg1: i32, %arg2: memref<64x128xbf16, #tpu.memory_space<vmem>>, %arg3: memref<128x16xf32, #tpu.memory_space<vmem>>, %arg4: memref<64x16xf32, #tpu.memory_space<vmem>>, %arg5: memref<64x1xf32, #tpu.memory_space<vmem>>, %arg6: memref<16x128xf32, #tpu.memory_space<vmem>>, %arg7: memref<16x256xf32, #tpu.memory_space<vmem>>, %arg8: memref<1x256xf32, #tpu.memory_space<vmem>>, %arg9: memref<64x128xf32, #tpu.memory_space<vmem>>) attributes {dimension_semantics = [#tpu.dimension_semantics<parallel>, #tpu.dimension_semantics<arbitrary>], iteration_bounds = array<i64: 2, 3>, scalar_prefetch = 0 : i64, scratch_operands = 0 : i64, tpu.core_type = #tpu.core_type<tc>, window_params = [{transform_indices = @transform_0, window_bounds = array<i64: 64, 128>}, {transform_indices = @transform_1, window_bounds = array<i64: 128, 16>}, {transform_indices = @transform_2, window_bounds = array<i64: 64, 16>}, {transform_indices = @transform_3, window_bounds = array<i64: 64, 1>}, {pipeline_mode = #tpu.pipeline_mode<synchronous>, transform_indices = @transform_4, window_bounds = array<i64: 16, 128>}, {pipeline_mode = #tpu.pipeline_mode<synchronous>, transform_indices = @transform_5, window_bounds = array<i64: 16, 256>}, {pipeline_mode = #tpu.pipeline_mode<synchronous>, transform_indices = @transform_6, window_bounds = array<i64: 1, 256>}, {transform_indices = @transform_7, window_bounds = array<i64: 64, 128>}]} {
    %c0_i32 = arith.constant 0 : i32
    %0 = arith.cmpi eq, %arg1, %c0_i32 : i32
    %1 = arith.extui %0 : i1 to i32
    %c0_i32_0 = arith.constant 0 : i32
    %2 = arith.cmpi ne, %1, %c0_i32_0 : i32
    scf.if %2 {
      %cst_12 = arith.constant 0.000000e+00 : f32
      %15 = vector.broadcast %cst_12 : f32 to vector<64x128xf32>
      %c0_13 = arith.constant 0 : index
      %c0_14 = arith.constant 0 : index
      %16 = vector.load %arg9[%c0_13, %c0_14] : memref<64x128xf32, #tpu.memory_space<vmem>>, vector<64x128xf32>
      tpu.vector_store %arg9[%c0_13, %c0_14], %15 {strides = array<i32>} : memref<64x128xf32, #tpu.memory_space<vmem>>, vector<64x128xf32>,
    } else {
    }
    %c0 = arith.constant 0 : index
    %c0_1 = arith.constant 0 : index
    %3 = vector.load %arg3[%c0, %c0_1] : memref<128x16xf32, #tpu.memory_space<vmem>>, vector<128x16xf32>
    %c0_2 = arith.constant 0 : index
    %c0_3 = arith.constant 0 : index
    %4 = vector.load %arg6[%c0_2, %c0_3] : memref<16x128xf32, #tpu.memory_space<vmem>>, vector<16x128xf32>
    %cst = arith.constant dense<0.000000e+00> : vector<128x128xf32>
    %5 = tpu.matmul %3, %4, %cst {dimension_numbers = #tpu.dot_dimension_numbers<[1], [0], [0], [1], [0, 0, 1, 1], [], []>} : vector<128x16xf32>, vector<16x128xf32>, vector<128x128xf32> -> vector<128x128xf32>
    %c0_4 = arith.constant 0 : index
    %c0_5 = arith.constant 0 : index
    %6 = vector.load %arg2[%c0_4, %c0_5] : memref<64x128xbf16, #tpu.memory_space<vmem>>, vector<64x128xbf16>
    %7 = arith.extf %6 : vector<64x128xbf16> to vector<64x128xf32>
    %c0_6 = arith.constant 0 : index
    %c0_7 = arith.constant 0 : index
    %8 = vector.load %arg9[%c0_6, %c0_7] : memref<64x128xf32, #tpu.memory_space<vmem>>, vector<64x128xf32>
    %cst_8 = arith.constant dense<0.000000e+00> : vector<64x128xf32>
    %9 = tpu.matmul %7, %5, %cst_8 {dimension_numbers = #tpu.dot_dimension_numbers<[1], [0], [0], [1], [0, 0, 1, 1], [], []>} : vector<64x128xf32>, vector<128x128xf32>, vector<64x128xf32> -> vector<64x128xf32>
    %10 = arith.addf %8, %9 : vector<64x128xf32>
    %c0_9 = arith.constant 0 : index
    %c0_10 = arith.constant 0 : index
    %11 = vector.load %arg9[%c0_9, %c0_10] : memref<64x128xf32, #tpu.memory_space<vmem>>, vector<64x128xf32>
    tpu.vector_store %arg9[%c0_9, %c0_10], %10 {strides = array<i32>} : memref<64x128xf32, #tpu.memory_space<vmem>>, vector<64x128xf32>,
    %c2_i32 = arith.constant 2 : i32
    %12 = arith.cmpi eq, %arg1, %c2_i32 : i32
    %13 = arith.extui %12 : i1 to i32
    %c0_i32_11 = arith.constant 0 : i32
    %14 = arith.cmpi ne, %13, %c0_i32_11 : i32
    scf.if %14 {
      %c0_12 = arith.constant 0 : index
      %c0_13 = arith.constant 0 : index
      %15 = vector.load %arg4[%c0_12, %c0_13] : memref<64x16xf32, #tpu.memory_space<vmem>>, vector<64x16xf32>
      %c0_14 = arith.constant 0 : index
      %c0_15 = arith.constant 0 : index
      %16 = vector.load %arg7[%c0_14, %c0_15] : memref<16x256xf32, #tpu.memory_space<vmem>>, vector<16x256xf32>
      %cst_16 = arith.constant dense<0.000000e+00> : vector<64x256xf32>
      %17 = tpu.matmul %15, %16, %cst_16 {dimension_numbers = #tpu.dot_dimension_numbers<[1], [0], [0], [1], [0, 0, 1, 1], [], []>} : vector<64x16xf32>, vector<16x256xf32>, vector<64x256xf32> -> vector<64x256xf32>
      %c0_17 = arith.constant 0 : index
      %c0_18 = arith.constant 0 : index
      %18 = vector.load %arg8[%c0_17, %c0_18] : memref<1x256xf32, #tpu.memory_space<vmem>>, vector<1x256xf32>
      %19 = vector.broadcast %18 : vector<1x256xf32> to vector<64x256xf32>
      %20 = arith.addf %17, %19 : vector<64x256xf32>
      %c0_19 = arith.constant 0 : index
      %c0_20 = arith.constant 0 : index
      %21 = vector.load %arg9[%c0_19, %c0_20] : memref<64x128xf32, #tpu.memory_space<vmem>>, vector<64x128xf32>
      %c0_21 = arith.constant 0 : index
      %c0_22 = arith.constant 0 : index
      %22 = vector.load %arg5[%c0_21, %c0_22] : memref<64x1xf32, #tpu.memory_space<vmem>>, vector<64x1xf32>
      %23 = vector.extract_strided_slice %20 {offsets = [0, 0], sizes = [64, 128], strides = [1, 1]} : vector<64x256xf32> to vector<64x128xf32>
      %24 = vector.broadcast %22 : vector<64x1xf32> to vector<64x128xf32>
      %25 = arith.mulf %24, %23 : vector<64x128xf32>
      %26 = vector.extract_strided_slice %20 {offsets = [0, 128], sizes = [64, 128], strides = [1, 1]} : vector<64x256xf32> to vector<64x128xf32>
      %27 = arith.addf %25, %26 : vector<64x128xf32>
      %28 = arith.addf %21, %27 : vector<64x128xf32>
      %c0_23 = arith.constant 0 : index
      %c0_24 = arith.constant 0 : index
      %29 = vector.load %arg9[%c0_23, %c0_24] : memref<64x128xf32, #tpu.memory_space<vmem>>, vector<64x128xf32>
      tpu.vector_store %arg9[%c0_23, %c0_24], %28 {strides = array<i32>} : memref<64x128xf32, #tpu.memory_space<vmem>>, vector<64x128xf32>,
    } else {
    }
    return
  }
  func.func @transform_0(%arg0: i32, %arg1: i32) -> (i32, i32) {
    %c0_i32 = arith.constant 0 : i32
    return %arg0, %arg1 : i32, i32
  }
  func.func @transform_1(%arg0: i32, %arg1: i32) -> (i32, i32) {
    %c0_i32 = arith.constant 0 : i32
    %c0_i32_0 = arith.constant 0 : i32
    return %arg1, %c0_i32 : i32, i32
  }
  func.func @transform_2(%arg0: i32, %arg1: i32) -> (i32, i32) {
    %c0_i32 = arith.constant 0 : i32
    %c0_i32_0 = arith.constant 0 : i32
    return %arg0, %c0_i32 : i32, i32
  }
  func.func @transform_3(%arg0: i32, %arg1: i32) -> (i32, i32) {
    %c0_i32 = arith.constant 0 : i32
    %c0_i32_0 = arith.constant 0 : i32
    return %arg0, %c0_i32 : i32, i32
  }
  func.func @transform_4(%arg0: i32, %arg1: i32) -> (i32, i32) {
    %c0_i32 = arith.constant 0 : i32
    %c0_i32_0 = arith.constant 0 : i32
    %c0_i32_1 = arith.constant 0 : i32
    return %c0_i32, %c0_i32_0 : i32, i32
  }
  func.func @transform_5(%arg0: i32, %arg1: i32) -> (i32, i32) {
    %c0_i32 = arith.constant 0 : i32
    %c0_i32_0 = arith.constant 0 : i32
    %c0_i32_1 = arith.constant 0 : i32
    return %c0_i32, %c0_i32_0 : i32, i32
  }
  func.func @transform_6(%arg0: i32, %arg1: i32) -> (i32, i32) {
    %c0_i32 = arith.constant 0 : i32
    %c0_i32_0 = arith.constant 0 : i32
    %c0_i32_1 = arith.constant 0 : i32
    return %c0_i32, %c0_i32_0 : i32, i32
  }
  func.func @transform_7(%arg0: i32, %arg1: i32) -> (i32, i32) {
    %c0_i32 = arith.constant 0 : i32
    %c0_i32_0 = arith.constant 0 : i32
    return %arg0, %c0_i32 : i32, i32
  }
}

</mosaic_0001>

<llo_original>
// kernel: tpu_custom_call.1
$region0: #{tpu_custom_call.1}
  #allocation0 [shape = 'u32[]', space=smem, size = 0x4, offset = 0x4, fixed_abs, tag = 'smem constant byte address 0x4 - core index']
  #allocation1 [shape = 'u32[72,128]{1,0:T(1,128)}', space=vmem, size = 0x9000, scoped, tag = 'internal scratch']
  %s0 = inlined_call_operand.vmem [shape: bf16[128,384], index: 0, kind: input, shape index: {}]
  %s1 = inlined_call_operand.vmem [shape: f32[384,16], index: 1, kind: input, shape index: {}]
  %s2 = inlined_call_operand.vmem [shape: f32[128,16], index: 2, kind: input, shape index: {}]
  %s3 = inlined_call_operand.vmem [shape: f32[128,1], index: 3, kind: input, shape index: {}]
  %s4 = inlined_call_operand.vmem [shape: f32[16,128], index: 4, kind: input, shape index: {}]
  %s5 = inlined_call_operand.vmem [shape: f32[16,256], index: 5, kind: input, shape index: {}]
  %s6 = inlined_call_operand.vmem [shape: f32[1,256], index: 6, kind: input, shape index: {}]
  %s7 = inlined_call_operand.hbm [shape: f32[128,128], index: 7, kind: output, shape index: {}]
  %s8 = sld [smem:[#allocation0]]
  $region110: #{tpu_custom_call.1} parent=0
    _
  %s10 = ssub.s32 1, %s8
  %s11 = scalar_select 0, %s10, %s8
  $region1: #{tpu_custom_call.1} parent=0
    #allocation2 [shape = 'u8[32768]{0}', space=vmem, size = 0x8000, scoped, tag = 'input window, operand 0']
    #allocation3 [shape = 'u8[65536]{0}', space=vmem, size = 0x10000, scoped, tag = 'output window, operand 0']
    #allocation4 [shape = 's32[2]{0}', space=sflag, size = 0x8, scoped, tag = 'scoped memory for tpu_custom_call.1']
    %12 = vsyncpa [#allocation4], 0
    %s13 = scalar_lea.sflag [#allocation4], 1
    %14 = vsyncpa %s13, 0
    loop: start=0, step=1, limit=8
    $region2: #{tpu_custom_call.1} parent=1 // loop_pre_header
      _
    $region3: #{tpu_custom_call.1} parent=1 // loop_header
      %s16 = sphi 0, %s20
      %p17 = scmp.ge.s32.totalorder %s16, 8
      %s23 = sphi 0, %s35
      %s24 = sphi 0, %s31
      %s25 = sphi 0, %s23
      %s26 = sphi 0, %s24
      %s27 = sphi 0, %s25
      %s28 = sphi 0, %s26
      %s40 = sphi 0, %s42
      %s43 = sphi 0, %s40
      %s44 = sphi 0, %s43
      %s60 = sphi 0, %s44
      %s66 = sphi 0, %s68
      %s69 = sphi 0, %s66
      %s70 = sphi 0, %s69
      %s86 = sphi 0, %s70
      %s92 = sphi 0, %s94
      %s95 = sphi 0, %s92
      %s96 = sphi 0, %s95
      %s112 = sphi 0, %s96
      %s118 = sphi 0, %s120
      %s121 = sphi 0, %s118
      %s122 = sphi 0, %s121
      %s138 = sphi 0, %s122
      %s142 = sphi 0, %s142
      %s144 = sphi 0, %s142
      %s145 = sphi 0, %s144
      %s159 = sphi 0, %s145
      %s163 = sphi 0, %s163
      %s165 = sphi 0, %s163
      %s166 = sphi 0, %s165
      %s180 = sphi 0, %s166
      %s184 = sphi 0, %s184
      %s186 = sphi 0, %s184
      %s187 = sphi 0, %s186
      %s201 = sphi 0, %s187
      %s207 = sphi 0, %s209
      %s210 = sphi 0, %s207
      %s211 = sphi 0, %s210
      %s227 = sphi 0, %s211
    $region4: #{tpu_custom_call.1} parent=1 // loop_header_branch
      %19 = sbr.rel (%p17) target = $region8
    $region5: #{tpu_custom_call.1} parent=1 // loop_body
      %s21 = ssub.s32 %s16, 1
      %s22 = ssub.s32 %s16, 2
      %s29 = sadd.s32 1, %s24
      %p30 = scmp.ge.s32.totalorder %s29, 3
      %s31 = scalar_select %p30, 0, %s29
      %s32 = sadd.s32 1, %s23
      %s33 = scalar_select %p30, %s32, %s23
      %p34 = scmp.ge.s32.totalorder %s33, 2
      %s35 = scalar_select %p34, 0, %s33
      %s36 = ssub.s32 %s23, %s35
      %s37 = ssub.s32 %s24, %s31
      %s38 = sor.u32 %s36, %s37
      %p39 = scmp.eq.s32.totalorder %s38, 0
      %s41 = sadd.s32 %s40, 1
      %s42 = scalar_select %p39, %s40, %s41
      %p45 = pneg %p39
      %p46 = scmp.eq.s32.totalorder %s16, 5
      %p47 = por %p45, %p46
      %p48 = scmp.ne.s32.totalorder %s40, %s43
      %p49 = scmp.eq.s32.totalorder %s16, 0
      %p50 = por %p48, %p49
      %p51 = scmp.ne.s32.totalorder %s40, %s43
      %p52 = scmp.eq.s32.totalorder %s21, 5
      %p53 = por %p51, %p52
      %p54 = scmp.ne.s32.totalorder %s43, %s44
      %p55 = scmp.eq.s32.totalorder %s21, 0
      %p56 = por %p54, %p55
      %p57 = scmp.ne.s32.totalorder %s43, %s44
      %p58 = scmp.eq.s32.totalorder %s22, 5
      %p59 = por %p57, %p58
      %p61 = scmp.ne.s32.totalorder %s44, %s60
      %p62 = scmp.eq.s32.totalorder %s22, 0
      %p63 = por %p61, %p62
      %s64 = ssub.s32 %s24, %s31
      %p65 = scmp.eq.s32.totalorder %s64, 0
      %s67 = sadd.s32 %s66, 1
      %s68 = scalar_select %p65, %s66, %s67
      %p71 = pneg %p65
      %p72 = scmp.eq.s32.totalorder %s16, 5
      %p73 = por %p71, %p72
      %p74 = scmp.ne.s32.totalorder %s66, %s69
      %p75 = scmp.eq.s32.totalorder %s16, 0
      %p76 = por %p74, %p75
      %p77 = scmp.ne.s32.totalorder %s66, %s69
      %p78 = scmp.eq.s32.totalorder %s21, 5
      %p79 = por %p77, %p78
      %p80 = scmp.ne.s32.totalorder %s69, %s70
      %p81 = scmp.eq.s32.totalorder %s21, 0
      %p82 = por %p80, %p81
      %p83 = scmp.ne.s32.totalorder %s69, %s70
      %p84 = scmp.eq.s32.totalorder %s22, 5
      %p85 = por %p83, %p84
      %p87 = scmp.ne.s32.totalorder %s70, %s86
      %p88 = scmp.eq.s32.totalorder %s22, 0
      %p89 = por %p87, %p88
      %s90 = ssub.s32 %s23, %s35
      %p91 = scmp.eq.s32.totalorder %s90, 0
      %s93 = sadd.s32 %s92, 1
      %s94 = scalar_select %p91, %s92, %s93
      %p97 = pneg %p91
      %p98 = scmp.eq.s32.totalorder %s16, 5
      %p99 = por %p97, %p98
      %p100 = scmp.ne.s32.totalorder %s92, %s95
      %p101 = scmp.eq.s32.totalorder %s16, 0
      %p102 = por %p100, %p101
      %p103 = scmp.ne.s32.totalorder %s92, %s95
      %p104 = scmp.eq.s32.totalorder %s21, 5
      %p105 = por %p103, %p104
      %p106 = scmp.ne.s32.totalorder %s95, %s96
      %p107 = scmp.eq.s32.totalorder %s21, 0
      %p108 = por %p106, %p107
      %p109 = scmp.ne.s32.totalorder %s95, %s96
      %p110 = scmp.eq.s32.totalorder %s22, 5
      %p111 = por %p109, %p110
      %p113 = scmp.ne.s32.totalorder %s96, %s112
      %p114 = scmp.eq.s32.totalorder %s22, 0
      %p115 = por %p113, %p114
      %s116 = ssub.s32 %s23, %s35
      %p117 = scmp.eq.s32.totalorder %s116, 0
      %s119 = sadd.s32 %s118, 1
      %s120 = scalar_select %p117, %s118, %s119
      %p123 = pneg %p117
      %p124 = scmp.eq.s32.totalorder %s16, 5
      %p125 = por %p123, %p124
      %p126 = scmp.ne.s32.totalorder %s118, %s121
      %p127 = scmp.eq.s32.totalorder %s16, 0
      %p128 = por %p126, %p127
      %p129 = scmp.ne.s32.totalorder %s118, %s121
      %p130 = scmp.eq.s32.totalorder %s21, 5
      %p131 = por %p129, %p130
      %p132 = scmp.ne.s32.totalorder %s121, %s122
      %p133 = scmp.eq.s32.totalorder %s21, 0
      %p134 = por %p132, %p133
      %p135 = scmp.ne.s32.totalorder %s121, %s122
      %p136 = scmp.eq.s32.totalorder %s22, 5
      %p137 = por %p135, %p136
      %p139 = scmp.ne.s32.totalorder %s122, %s138
      %p140 = scmp.eq.s32.totalorder %s22, 0
      %p141 = por %p139, %p140
      %s143 = sadd.s32 %s142, 1
      %p146 = scmp.eq.s32.totalorder %s16, 5
      %p147 = scmp.ne.s32.totalorder %s142, %s144
      %p148 = scmp.eq.s32.totalorder %s16, 0
      %p149 = por %p147, %p148
      %p150 = scmp.ne.s32.totalorder %s142, %s144
      %p151 = scmp.eq.s32.totalorder %s21, 5
      %p152 = por %p150, %p151
      %p153 = scmp.ne.s32.totalorder %s144, %s145
      %p154 = scmp.eq.s32.totalorder %s21, 0
      %p155 = por %p153, %p154
      %p156 = scmp.ne.s32.totalorder %s144, %s145
      %p157 = scmp.eq.s32.totalorder %s22, 5
      %p158 = por %p156, %p157
      %p160 = scmp.ne.s32.totalorder %s145, %s159
      %p161 = scmp.eq.s32.totalorder %s22, 0
      %p162 = por %p160, %p161
      %s164 = sadd.s32 %s163, 1
      %p167 = scmp.eq.s32.totalorder %s16, 5
      %p168 = scmp.ne.s32.totalorder %s163, %s165
      %p169 = scmp.eq.s32.totalorder %s16, 0
      %p170 = por %p168, %p169
      %p171 = scmp.ne.s32.totalorder %s163, %s165
      %p172 = scmp.eq.s32.totalorder %s21, 5
      %p173 = por %p171, %p172
      %p174 = scmp.ne.s32.totalorder %s165, %s166
      %p175 = scmp.eq.s32.totalorder %s21, 0
      %p176 = por %p174, %p175
      %p177 = scmp.ne.s32.totalorder %s165, %s166
      %p178 = scmp.eq.s32.totalorder %s22, 5
      %p179 = por %p177, %p178
      %p181 = scmp.ne.s32.totalorder %s166, %s180
      %p182 = scmp.eq.s32.totalorder %s22, 0
      %p183 = por %p181, %p182
      %s185 = sadd.s32 %s184, 1
      %p188 = scmp.eq.s32.totalorder %s16, 5
      %p189 = scmp.ne.s32.totalorder %s184, %s186
      %p190 = scmp.eq.s32.totalorder %s16, 0
      %p191 = por %p189, %p190
      %p192 = scmp.ne.s32.totalorder %s184, %s186
      %p193 = scmp.eq.s32.totalorder %s21, 5
      %p194 = por %p192, %p193
      %p195 = scmp.ne.s32.totalorder %s186, %s187
      %p196 = scmp.eq.s32.totalorder %s21, 0
      %p197 = por %p195, %p196
      %p198 = scmp.ne.s32.totalorder %s186, %s187
      %p199 = scmp.eq.s32.totalorder %s22, 5
      %p200 = por %p198, %p199
      %p202 = scmp.ne.s32.totalorder %s187, %s201
      %p203 = scmp.eq.s32.totalorder %s22, 0
      %p204 = por %p202, %p203
      %s205 = ssub.s32 %s23, %s35
      %p206 = scmp.eq.s32.totalorder %s205, 0
      %s208 = sadd.s32 %s207, 1
      %s209 = scalar_select %p206, %s207, %s208
      %p212 = pneg %p206
      %p213 = scmp.eq.s32.totalorder %s16, 5
      %p214 = por %p212, %p213
      %p215 = scmp.ne.s32.totalorder %s207, %s210
      %p216 = scmp.eq.s32.totalorder %s16, 0
      %p217 = por %p215, %p216
      %p218 = scmp.ne.s32.totalorder %s207, %s210
      %p219 = scmp.eq.s32.totalorder %s21, 5
      %p220 = por %p218, %p219
      %p221 = scmp.ne.s32.totalorder %s210, %s211
      %p222 = scmp.eq.s32.totalorder %s21, 0
      %p223 = por %p221, %p222
      %p224 = scmp.ne.s32.totalorder %s210, %s211
      %p225 = scmp.eq.s32.totalorder %s22, 5
      %p226 = por %p224, %p225
      %p228 = scmp.ne.s32.totalorder %s211, %s227
      %p229 = scmp.eq.s32.totalorder %s22, 0
      %p230 = por %p228, %p229
      %p231 = scmp.le.s32.totalorder 1, %s16
      %p232 = scmp.lt.s32.totalorder %s16, 7
      %p233 = pnand %p231, %p232
      %p234 = pneg %p233
      // Predicated region
      $region9: #{tpu_custom_call.1} parent=5 // pred_check
        _
      $region10: #{tpu_custom_call.1} parent=5 // pred_check_branch
        %236 = sbr.rel (%p233) target = $region12
      $region11: #{tpu_custom_call.1} parent=5 // pred_region
        %s237 = ssub.s32 %s16, 1
        // Predicated region
        $region13: #{tpu_custom_call.1} parent=11 // pred_check
          %p238 = pneg %p155
        $region14: #{tpu_custom_call.1} parent=11 // pred_check_branch
          %240 = sbr.rel (%p238) target = $region16
        $region15: #{tpu_custom_call.1} parent=11 // pred_region
          _
        $region16: #{tpu_custom_call.1} parent=11 // pred_fallthru
          _
        // Predicated region
        $region17: #{tpu_custom_call.1} parent=11 // pred_check
          %p241 = pneg %p176
        $region18: #{tpu_custom_call.1} parent=11 // pred_check_branch
          %243 = sbr.rel (%p241) target = $region20
        $region19: #{tpu_custom_call.1} parent=11 // pred_region
          _
        $region20: #{tpu_custom_call.1} parent=11 // pred_fallthru
          _
        // Predicated region
        $region21: #{tpu_custom_call.1} parent=11 // pred_check
          %p244 = pneg %p197
        $region22: #{tpu_custom_call.1} parent=11 // pred_check_branch
          %246 = sbr.rel (%p244) target = $region24
        $region23: #{tpu_custom_call.1} parent=11 // pred_region
          _
        $region24: #{tpu_custom_call.1} parent=11 // pred_fallthru
          _
      $region12: #{tpu_custom_call.1} parent=5 // pred_fallthru
        _
      %p247 = scmp.lt.s32.totalorder %s16, 6
      // Predicated region
      $region25: #{tpu_custom_call.1} parent=5 // pred_check
        %p248 = pneg %p247
      $region26: #{tpu_custom_call.1} parent=5 // pred_check_branch
        %250 = sbr.rel (%p248) target = $region28
      $region27: #{tpu_custom_call.1} parent=5 // pred_region
        // Predicated region
        $region29: #{tpu_custom_call.1} parent=27 // pred_check
          %p251 = pneg %p50
        $region30: #{tpu_custom_call.1} parent=27 // pred_check_branch
          %253 = sbr.rel (%p251) target = $region32
        $region31: #{tpu_custom_call.1} parent=27 // pred_region
          %s254 = sand.u32 %s40, 1
          %s255 = sand.u32 %s40, 1
          %s256 = smul.addr %s255, 32
          %s257 = scalar_lea.vmem [#allocation2], %s256
          %s258 = smul.u32 8, %s23
          %s259 = smul.addr %s258, 3
          %s260 = sadd.s32 %s24, %s259
          %s261 = smul.addr %s260, 4
          %s262 = scalar_lea.vmem %s0, %s261
          // Predicated region
          $region33: #{tpu_custom_call.1} parent=31 // pred_check
            _
          $region34: #{tpu_custom_call.1} parent=31 // pred_check_branch
            %264 = sbr.rel (0) target = $region36
          $region35: #{tpu_custom_call.1} parent=31 // pred_region
            // Predicated region
            $region37: #{tpu_custom_call.1} parent=35 // pred_check
              _
            $region38: #{tpu_custom_call.1} parent=35 // pred_check_branch
              %266 = sbr.rel target = $region40
            $region39: #{tpu_custom_call.1} parent=35 // pred_region
              // Predicated region
              $region52: #{tpu_custom_call.1} parent=39 // pred_check
                _
              $region53: #{tpu_custom_call.1} parent=39 // pred_check_branch
                %296 = sbr.rel (0) target = $region55
              $region54: #{tpu_custom_call.1} parent=39 // pred_region
                loop: start=0, step=1, limit=1
                $region56: #{tpu_custom_call.1} parent=54 // loop_pre_header
                  _
                $region57: #{tpu_custom_call.1} parent=54 // loop_header
                  %s298 = sphi 0, %s302
                  %p299 = scmp.ge.s32.totalorder %s298, 1
                  %s303 = sphi %s262, %s262
                  %s304 = sphi %s257, %s257
                $region58: #{tpu_custom_call.1} parent=54 // loop_header_branch
                  %301 = sbr.rel (%p299) target = $region62
                $region59: #{tpu_custom_call.1} parent=54 // loop_body
                  _
                $region60: #{tpu_custom_call.1} parent=54 // loop_footer
                  %s302 = sadd.s32 1, %s298
                $region61: #{tpu_custom_call.1} parent=54 // loop_footer_branch
                  %297 = sbr.rel target = $region57
                $region62: #{tpu_custom_call.1} parent=54 // loop_exit
                  _
                %s306 = ssub.s32 16, 1
                loop: start=0, step=1, limit=1
                $region63: #{tpu_custom_call.1} parent=54 // loop_pre_header
                  _
                $region64: #{tpu_custom_call.1} parent=54 // loop_header
                  %s308 = sphi 0, %s312
                  %p309 = scmp.ge.s32.totalorder %s308, 1
                  %s313 = sphi %s262, %s262
                  %s314 = sphi %s257, %s257
                $region65: #{tpu_custom_call.1} parent=54 // loop_header_branch
                  %311 = sbr.rel (%p309) target = $region69
                $region66: #{tpu_custom_call.1} parent=54 // loop_body
                  %v315 = vld [vmem:[%s313] sm:%s306]
                  %316 = vst [vmem:[%s314] sm:%s306] %v315
                  %v317 = vld [vmem:[%s313 + $0xc] sm:%s306]
                  %318 = vst [vmem:[%s314 + $0x4] sm:%s306] %v317
                  %v319 = vld [vmem:[%s313 + $0x18] sm:%s306]
                  %320 = vst [vmem:[%s314 + $0x8] sm:%s306] %v319
                  %v321 = vld [vmem:[%s313 + $0x24] sm:%s306]
                  %322 = vst [vmem:[%s314 + $0xc] sm:%s306] %v321
                  %v323 = vld [vmem:[%s313 + $0x30] sm:%s306]
                  %324 = vst [vmem:[%s314 + $0x10] sm:%s306] %v323
                  %v325 = vld [vmem:[%s313 + $0x3c] sm:%s306]
                  %326 = vst [vmem:[%s314 + $0x14] sm:%s306] %v325
                  %v327 = vld [vmem:[%s313 + $0x48] sm:%s306]
                  %328 = vst [vmem:[%s314 + $0x18] sm:%s306] %v327
                  %v329 = vld [vmem:[%s313 + $0x54] sm:%s306]
                  %330 = vst [vmem:[%s314 + $0x1c] sm:%s306] %v329
                $region67: #{tpu_custom_call.1} parent=54 // loop_footer
                  %s312 = sadd.s32 1, %s308
                $region68: #{tpu_custom_call.1} parent=54 // loop_footer_branch
                  %307 = sbr.rel target = $region64
                $region69: #{tpu_custom_call.1} parent=54 // loop_exit
                  _
              $region55: #{tpu_custom_call.1} parent=39 // pred_fallthru
                _
            $region40: #{tpu_custom_call.1} parent=35 // pred_fallthru
              _
            // Predicated region
            $region41: #{tpu_custom_call.1} parent=35 // pred_check
              _
            $region42: #{tpu_custom_call.1} parent=35 // pred_check_branch
              %268 = sbr.rel (0) target = $region44
            $region43: #{tpu_custom_call.1} parent=35 // pred_region
              %s270 = ssub.s32 16, 1
              loop: start=0, step=1, limit=1
              $region45: #{tpu_custom_call.1} parent=43 // loop_pre_header
                _
              $region46: #{tpu_custom_call.1} parent=43 // loop_header
                %s272 = sphi 0, %s276
                %p273 = scmp.ge.s32.totalorder %s272, 1
                %s277 = sphi %s262, %s262
                %s278 = sphi %s257, %s257
              $region47: #{tpu_custom_call.1} parent=43 // loop_header_branch
                %275 = sbr.rel (%p273) target = $region51
              $region48: #{tpu_custom_call.1} parent=43 // loop_body
                %v279 = vld [vmem:[%s277] sm:%s270]
                %280 = vst [vmem:[%s278] sm:%s270] %v279
                %v281 = vld [vmem:[%s277 + $0xc] sm:%s270]
                %282 = vst [vmem:[%s278 + $0x4] sm:%s270] %v281
                %v283 = vld [vmem:[%s277 + $0x18] sm:%s270]
                %284 = vst [vmem:[%s278 + $0x8] sm:%s270] %v283
                %v285 = vld [vmem:[%s277 + $0x24] sm:%s270]
                %286 = vst [vmem:[%s278 + $0xc] sm:%s270] %v285
                %v287 = vld [vmem:[%s277 + $0x30] sm:%s270]
                %288 = vst [vmem:[%s278 + $0x10] sm:%s270] %v287
                %v289 = vld [vmem:[%s277 + $0x3c] sm:%s270]
                %290 = vst [vmem:[%s278 + $0x14] sm:%s270] %v289
                %v291 = vld [vmem:[%s277 + $0x48] sm:%s270]
                %292 = vst [vmem:[%s278 + $0x18] sm:%s270] %v291
                %v293 = vld [vmem:[%s277 + $0x54] sm:%s270]
                %294 = vst [vmem:[%s278 + $0x1c] sm:%s270] %v293
              $region49: #{tpu_custom_call.1} parent=43 // loop_footer
                %s276 = sadd.s32 1, %s272
              $region50: #{tpu_custom_call.1} parent=43 // loop_footer_branch
                %271 = sbr.rel target = $region46
              $region51: #{tpu_custom_call.1} parent=43 // loop_exit
                _
            $region44: #{tpu_custom_call.1} parent=35 // pred_fallthru
              _
          $region36: #{tpu_custom_call.1} parent=31 // pred_fallthru
            _
          %331 = vnop
        $region32: #{tpu_custom_call.1} parent=27 // pred_fallthru
          _
        // Predicated region
        $region70: #{tpu_custom_call.1} parent=27 // pred_check
          %p332 = pneg %p76
        $region71: #{tpu_custom_call.1} parent=27 // pred_check_branch
          %334 = sbr.rel (%p332) target = $region73
        $region72: #{tpu_custom_call.1} parent=27 // pred_region
          %s335 = smul.u32 16, %s24
          %p336 = scmp.lt.s32.totalorder %s335, 47
          %s337 = scalar_select %p336, %s335, 47
          %s338 = smul.addr %s337, 8
          %s339 = scalar_lea.vmem %s1, %s338
          %s340 = smul.u32 16, %s24
        $region73: #{tpu_custom_call.1} parent=27 // pred_fallthru
          _
        // Predicated region
        $region74: #{tpu_custom_call.1} parent=27 // pred_check
          %p341 = pneg %p102
        $region75: #{tpu_custom_call.1} parent=27 // pred_check_branch
          %343 = sbr.rel (%p341) target = $region77
        $region76: #{tpu_custom_call.1} parent=27 // pred_region
          %s344 = smul.u32 8, %s23
          %p345 = scmp.lt.s32.totalorder %s344, 15
          %s346 = scalar_select %p345, %s344, 15
          %s347 = smul.addr %s346, 8
          %s348 = scalar_lea.vmem %s2, %s347
          %s349 = smul.u32 8, %s23
        $region77: #{tpu_custom_call.1} parent=27 // pred_fallthru
          _
        // Predicated region
        $region78: #{tpu_custom_call.1} parent=27 // pred_check
          %p350 = pneg %p128
        $region79: #{tpu_custom_call.1} parent=27 // pred_check_branch
          %352 = sbr.rel (%p350) target = $region81
        $region80: #{tpu_custom_call.1} parent=27 // pred_region
          %s353 = smul.u32 8, %s23
          %p354 = scmp.lt.s32.totalorder %s353, 15
          %s355 = scalar_select %p354, %s353, 15
          %s356 = smul.addr %s355, 8
          %s357 = scalar_lea.vmem %s3, %s356
          %s358 = smul.u32 8, %s23
        $region81: #{tpu_custom_call.1} parent=27 // pred_fallthru
          _
      $region28: #{tpu_custom_call.1} parent=5 // pred_fallthru
        _
      %p359 = scmp.le.s32.totalorder 1, %s16
      %p360 = scmp.lt.s32.totalorder %s16, 7
      %p361 = pnand %p359, %p360
      %p362 = pneg %p361
      // Predicated region
      $region82: #{tpu_custom_call.1} parent=5 // pred_check
        _
      $region83: #{tpu_custom_call.1} parent=5 // pred_check_branch
        %364 = sbr.rel (%p361) target = $region85
      $region84: #{tpu_custom_call.1} parent=5 // pred_region
        %s365 = ssub.s32 %s16, 1
        %s366 = sand.u32 %s43, 1
        %s367 = sand.u32 %s43, 1
        %s368 = smul.addr %s367, 32
        %s369 = scalar_lea.vmem [#allocation2], %s368
        // Predicated region
        $region86: #{tpu_custom_call.1} parent=84 // pred_check
          %p370 = pneg %p56
        $region87: #{tpu_custom_call.1} parent=84 // pred_check_branch
          %372 = sbr.rel (%p370) target = $region89
        $region88: #{tpu_custom_call.1} parent=84 // pred_region
          _
        $region89: #{tpu_custom_call.1} parent=84 // pred_fallthru
          _
        %s373 = sand.u32 %s43, 1
        %s374 = sand.u32 %s43, 1
        %s375 = smul.addr %s374, 32
        %s376 = scalar_lea.vmem [#allocation2], %s375
        %p377 = pneg %p56
        %p378 = pneg %p53
        %s379 = smul.u32 16, %s26
        %p380 = scmp.lt.s32.totalorder %s379, 47
        %s381 = scalar_select %p380, %s379, 47
        %s382 = smul.addr %s381, 8
        %s383 = scalar_lea.vmem %s1, %s382
        %p384 = pneg %p82
        %p385 = pneg %p79
        %s386 = smul.u32 8, %s25
        %p387 = scmp.lt.s32.totalorder %s386, 15
        %s388 = scalar_select %p387, %s386, 15
        %s389 = smul.addr %s388, 8
        %s390 = scalar_lea.vmem %s2, %s389
        %p391 = pneg %p108
        %p392 = pneg %p105
        %s393 = smul.u32 8, %s25
        %p394 = scmp.lt.s32.totalorder %s393, 15
        %s395 = scalar_select %p394, %s393, 15
        %s396 = smul.addr %s395, 8
        %s397 = scalar_lea.vmem %s3, %s396
        %p398 = pneg %p134
        %p399 = pneg %p131
        %p400 = pneg %p155
        %p401 = pneg %p152
        %p402 = pneg %p176
        %p403 = pneg %p173
        %p404 = pneg %p197
        %p405 = pneg %p194
        %p406 = pneg %p223
        %p407 = pneg %p220
        %s408 = sand.u32 %s210, 1
        %s409 = scalar_lea.sflag [#allocation4], %s408
        %s410 = sand.u32 %s210, 1
        %s411 = smul.addr %s410, 64
        %s412 = scalar_lea.vmem [#allocation3], %s411
        %s413 = smul.u32 8, %s25
        %s414 = smul.u32 16, %s26
        %p415 = scmp.lt.s32.totalorder %s414, 47
        %s416 = scalar_select %p415, %s414, 47
        %s417 = smul.addr %s416, 8
        %s418 = scalar_lea.vmem %s1, %s417
        %s419 = smul.u32 16, %s26
        %s420 = smul.u32 8, %s25
        %p421 = scmp.lt.s32.totalorder %s420, 15
        %s422 = scalar_select %p421, %s420, 15
        %s423 = smul.addr %s422, 8
        %s424 = scalar_lea.vmem %s2, %s423
        %s425 = smul.u32 8, %s25
        %s426 = smul.u32 8, %s25
        %p427 = scmp.lt.s32.totalorder %s426, 15
        %s428 = scalar_select %p427, %s426, 15
        %s429 = smul.addr %s428, 8
        %s430 = scalar_lea.vmem %s3, %s429
        %s431 = smul.u32 8, %s25
        %s432 = smul.u32 8, %s25
        %p433 = scmp.eq.s32.totalorder %s26, 0
        // Predicated region
        $region90: #{tpu_custom_call.1} parent=84 // pred_check
          %p434 = pneg %p433
        $region91: #{tpu_custom_call.1} parent=84 // pred_check_branch
          %436 = sbr.rel (%p434) target = $region93
        $region92: #{tpu_custom_call.1} parent=84 // pred_region
          %437 = vst [vmem:[%s412] sm:$0xff] 0.0
          %438 = vst [vmem:[%s412 + $0x8] sm:$0xff] 0.0
          %439 = vst [vmem:[%s412 + $0x10] sm:$0xff] 0.0
          %440 = vst [vmem:[%s412 + $0x18] sm:$0xff] 0.0
          %441 = vst [vmem:[%s412 + $0x20] sm:$0xff] 0.0
          %442 = vst [vmem:[%s412 + $0x28] sm:$0xff] 0.0
          %443 = vst [vmem:[%s412 + $0x30] sm:$0xff] 0.0
          %444 = vst [vmem:[%s412 + $0x38] sm:$0xff] 0.0
        $region93: #{tpu_custom_call.1} parent=84 // pred_fallthru
          _
        %v445 = vld [vmem:[%s418] sm:$0xff]
        %v446 = vld [vmem:[%s418 + $0x8] sm:$0xff]
        %v447 = vld [vmem:[%s418 + $0x10] sm:$0xff]
        %v448 = vld [vmem:[%s418 + $0x18] sm:$0xff]
        %v449 = vld [vmem:[%s418 + $0x20] sm:$0xff]
        %v450 = vld [vmem:[%s418 + $0x28] sm:$0xff]
        %v451 = vld [vmem:[%s418 + $0x30] sm:$0xff]
        %v452 = vld [vmem:[%s418 + $0x38] sm:$0xff]
        %v453 = vld [vmem:[%s418 + $0x40] sm:$0xff]
        %v454 = vld [vmem:[%s418 + $0x48] sm:$0xff]
        %v455 = vld [vmem:[%s418 + $0x50] sm:$0xff]
        %v456 = vld [vmem:[%s418 + $0x58] sm:$0xff]
        %v457 = vld [vmem:[%s418 + $0x60] sm:$0xff]
        %v458 = vld [vmem:[%s418 + $0x68] sm:$0xff]
        %v459 = vld [vmem:[%s418 + $0x70] sm:$0xff]
        %v460 = vld [vmem:[%s418 + $0x78] sm:$0xff]
        %v461 = vld [vmem:[%s4] sm:$0xff]
        %v462 = vld [vmem:[%s4 + $0x8] sm:$0xff]
        %vm463 = vcmask 130048
        %v465 = vsel %vm463, %v445, 0
        %v468 = vsel %vm463, %v446, 0
        %v471 = vsel %vm463, %v447, 0
        %v474 = vsel %vm463, %v448, 0
        %v477 = vsel %vm463, %v449, 0
        %v480 = vsel %vm463, %v450, 0
        %v483 = vsel %vm463, %v451, 0
        %v486 = vsel %vm463, %v452, 0
        %v489 = vsel %vm463, %v453, 0
        %v492 = vsel %vm463, %v454, 0
        %v495 = vsel %vm463, %v455, 0
        %v498 = vsel %vm463, %v456, 0
        %v501 = vsel %vm463, %v457, 0
        %v504 = vsel %vm463, %v458, 0
        %v507 = vsel %vm463, %v459, 0
        %v510 = vsel %vm463, %v460, 0
        %512 = vmatpush.msra.mxu0 0.0
        %513 = vmatpush.msra.mxu0 0.0
        %514 = vmatpush.msra.mxu0 0.0
        %515 = vmatpush.msra.mxu0 0.0
        %516 = vmatpush.msra.mxu0 0.0
        %517 = vmatpush.msra.mxu0 0.0
        %518 = vmatpush.msra.mxu0 0.0
        %519 = vmatpush.msra.mxu0 0.0
        %520 = vmatpush.msra.mxu0 0.0
        %521 = vmatpush.msra.mxu0 0.0
        %522 = vmatpush.msra.mxu0 0.0
        %523 = vmatpush.msra.mxu0 0.0
        %524 = vmatpush.msra.mxu0 0.0
        %525 = vmatpush.msra.mxu0 0.0
        %526 = vmatpush.msra.mxu0 %v462
        %527 = vmatpush.msra.mxu0 %v461
        %528 = vmatmul.f32.gmra.mxu0 %v465
        %v529 = vpop.f32.mrf.mxu0
        %v530 = vadd.f32 0.0, %v529
        %531 = vmatmul.f32.gmra.mxu0 %v468
        %v532 = vpop.f32.mrf.mxu0
        %v533 = vadd.f32 0.0, %v532
        %534 = vmatmul.f32.gmra.mxu0 %v471
        %v535 = vpop.f32.mrf.mxu0
        %v536 = vadd.f32 0.0, %v535
        %537 = vmatmul.f32.gmra.mxu0 %v474
        %v538 = vpop.f32.mrf.mxu0
        %v539 = vadd.f32 0.0, %v538
        %540 = vmatmul.f32.gmra.mxu0 %v477
        %v541 = vpop.f32.mrf.mxu0
        %v542 = vadd.f32 0.0, %v541
        %543 = vmatmul.f32.gmra.mxu0 %v480
        %v544 = vpop.f32.mrf.mxu0
        %v545 = vadd.f32 0.0, %v544
        %546 = vmatmul.f32.gmra.mxu0 %v483
        %v547 = vpop.f32.mrf.mxu0
        %v548 = vadd.f32 0.0, %v547
        %549 = vmatmul.f32.gmra.mxu0 %v486
        %v550 = vpop.f32.mrf.mxu0
        %v551 = vadd.f32 0.0, %v550
        %552 = vmatmul.f32.gmra.mxu0 %v489
        %v553 = vpop.f32.mrf.mxu0
        %v554 = vadd.f32 0.0, %v553
        %555 = vmatmul.f32.gmra.mxu0 %v492
        %v556 = vpop.f32.mrf.mxu0
        %v557 = vadd.f32 0.0, %v556
        %558 = vmatmul.f32.gmra.mxu0 %v495
        %v559 = vpop.f32.mrf.mxu0
        %v560 = vadd.f32 0.0, %v559
        %561 = vmatmul.f32.gmra.mxu0 %v498
        %v562 = vpop.f32.mrf.mxu0
        %v563 = vadd.f32 0.0, %v562
        %564 = vmatmul.f32.gmra.mxu0 %v501
        %v565 = vpop.f32.mrf.mxu0
        %v566 = vadd.f32 0.0, %v565
        %567 = vmatmul.f32.gmra.mxu0 %v504
        %v568 = vpop.f32.mrf.mxu0
        %v569 = vadd.f32 0.0, %v568
        %570 = vmatmul.f32.gmra.mxu0 %v507
        %v571 = vpop.f32.mrf.mxu0
        %v572 = vadd.f32 0.0, %v571
        %573 = vmatmul.f32.gmra.mxu0 %v510
        %v574 = vpop.f32.mrf.mxu0
        %v575 = vadd.f32 0.0, %v574
        %576 = vdwg.mxu0
        %v577 = vld [vmem:[%s369] sm:$0xf]
        %v578 = vld [vmem:[%s369 + $0x4] sm:$0xf]
        %v579 = vld [vmem:[%s369 + $0x8] sm:$0xf]
        %v580 = vld [vmem:[%s369 + $0xc] sm:$0xf]
        %v581 = vld [vmem:[%s369 + $0x10] sm:$0xf]
        %v582 = vld [vmem:[%s369 + $0x14] sm:$0xf]
        %v583 = vld [vmem:[%s369 + $0x18] sm:$0xf]
        %v584 = vld [vmem:[%s369 + $0x1c] sm:$0xf]
        %v585 = vunpack.c.l.bf16 %v577
        %v586 = vunpack.c.l.bf16 %v578
        %v587 = vunpack.c.l.bf16 %v579
        %v588 = vunpack.c.l.bf16 %v580
        %v589 = vunpack.c.l.bf16 %v581
        %v590 = vunpack.c.l.bf16 %v582
        %v591 = vunpack.c.l.bf16 %v583
        %v592 = vunpack.c.l.bf16 %v584
        %v593 = vld [vmem:[%s412] sm:$0xff]
        %v594 = vld [vmem:[%s412 + $0x8] sm:$0xff]
        %v595 = vld [vmem:[%s412 + $0x10] sm:$0xff]
        %v596 = vld [vmem:[%s412 + $0x18] sm:$0xff]
        %v597 = vld [vmem:[%s412 + $0x20] sm:$0xff]
        %v598 = vld [vmem:[%s412 + $0x28] sm:$0xff]
        %v599 = vld [vmem:[%s412 + $0x30] sm:$0xff]
        %v600 = vld [vmem:[%s412 + $0x38] sm:$0xff]
        %601 = vmatpush.msra.mxu0 %v575
        %602 = vmatpush.msra.mxu0 %v572
        %603 = vmatpush.msra.mxu0 %v569
        %604 = vmatpush.msra.mxu0 %v566
        %605 = vmatpush.msra.mxu0 %v563
        %606 = vmatpush.msra.mxu0 %v560
        %607 = vmatpush.msra.mxu0 %v557
        %608 = vmatpush.msra.mxu0 %v554
        %609 = vmatpush.msra.mxu0 %v551
        %610 = vmatpush.msra.mxu0 %v548
        %611 = vmatpush.msra.mxu0 %v545
        %612 = vmatpush.msra.mxu0 %v542
        %613 = vmatpush.msra.mxu0 %v539
        %614 = vmatpush.msra.mxu0 %v536
        %615 = vmatpush.msra.mxu0 %v533
        %616 = vmatpush.msra.mxu0 %v530
        %617 = vmatmul.f32.gmra.mxu0 %v585
        %v618 = vpop.f32.mrf.mxu0
        %v619 = vadd.f32 0.0, %v618
        %620 = vmatmul.f32.gmra.mxu0 %v586
        %v621 = vpop.f32.mrf.mxu0
        %v622 = vadd.f32 0.0, %v621
        %623 = vmatmul.f32.gmra.mxu0 %v587
        %v624 = vpop.f32.mrf.mxu0
        %v625 = vadd.f32 0.0, %v624
        %626 = vmatmul.f32.gmra.mxu0 %v588
        %v627 = vpop.f32.mrf.mxu0
        %v628 = vadd.f32 0.0, %v627
        %629 = vmatmul.f32.gmra.mxu0 %v589
        %v630 = vpop.f32.mrf.mxu0
        %v631 = vadd.f32 0.0, %v630
        %632 = vmatmul.f32.gmra.mxu0 %v590
        %v633 = vpop.f32.mrf.mxu0
        %v634 = vadd.f32 0.0, %v633
        %635 = vmatmul.f32.gmra.mxu0 %v591
        %v636 = vpop.f32.mrf.mxu0
        %v637 = vadd.f32 0.0, %v636
        %638 = vmatmul.f32.gmra.mxu0 %v592
        %v639 = vpop.f32.mrf.mxu0
        %v640 = vadd.f32 0.0, %v639
        %641 = vdwg.mxu0
        %v642 = vadd.f32 %v593, %v619
        %v643 = vadd.f32 %v594, %v622
        %v644 = vadd.f32 %v595, %v625
        %v645 = vadd.f32 %v596, %v628
        %v646 = vadd.f32 %v597, %v631
        %v647 = vadd.f32 %v598, %v634
        %v648 = vadd.f32 %v599, %v637
        %v649 = vadd.f32 %v600, %v640
        %650 = vst [vmem:[%s412] sm:$0xff] %v642
        %651 = vst [vmem:[%s412 + $0x8] sm:$0xff] %v643
        %652 = vst [vmem:[%s412 + $0x10] sm:$0xff] %v644
        %653 = vst [vmem:[%s412 + $0x18] sm:$0xff] %v645
        %654 = vst [vmem:[%s412 + $0x20] sm:$0xff] %v646
        %655 = vst [vmem:[%s412 + $0x28] sm:$0xff] %v647
        %656 = vst [vmem:[%s412 + $0x30] sm:$0xff] %v648
        %657 = vst [vmem:[%s412 + $0x38] sm:$0xff] %v649
        %p658 = scmp.eq.s32.totalorder %s26, 2
        // Predicated region
        $region94: #{tpu_custom_call.1} parent=84 // pred_check
          %p659 = pneg %p658
        $region95: #{tpu_custom_call.1} parent=84 // pred_check_branch
          %661 = sbr.rel (%p659) target = $region97
        $region96: #{tpu_custom_call.1} parent=84 // pred_region
          %v662 = vld [vmem:[%s424] sm:$0xff]
          %v663 = vld [vmem:[%s424 + $0x8] sm:$0xff]
          %v664 = vld [vmem:[%s424 + $0x10] sm:$0xff]
          %v665 = vld [vmem:[%s424 + $0x18] sm:$0xff]
          %v666 = vld [vmem:[%s424 + $0x20] sm:$0xff]
          %v667 = vld [vmem:[%s424 + $0x28] sm:$0xff]
          %v668 = vld [vmem:[%s424 + $0x30] sm:$0xff]
          %v669 = vld [vmem:[%s424 + $0x38] sm:$0xff]
          %v670 = vld [vmem:[%s5] sm:$0xff]
          %v671 = vld [vmem:[%s5 + $0x8] sm:$0xff]
          %v672 = vld [vmem:[%s5 + $0x10] sm:$0xff]
          %v673 = vld [vmem:[%s5 + $0x18] sm:$0xff]
          %v674 = vld [vmem:[%s6] sm:$0x3]
          %v676 = vperm.slane %v674, 0
          %v677 = vperm.slane %v674, 1
          %v681 = vsel %vm463, %v662, 0
          %v684 = vsel %vm463, %v663, 0
          %v687 = vsel %vm463, %v664, 0
          %v690 = vsel %vm463, %v665, 0
          %v693 = vsel %vm463, %v666, 0
          %v696 = vsel %vm463, %v667, 0
          %v699 = vsel %vm463, %v668, 0
          %v702 = vsel %vm463, %v669, 0
          %704 = vmatpush.msra.mxu0 0.0
          %705 = vmatpush.msra.mxu0 0.0
          %706 = vmatpush.msra.mxu0 0.0
          %707 = vmatpush.msra.mxu0 0.0
          %708 = vmatpush.msra.mxu0 0.0
          %709 = vmatpush.msra.mxu0 0.0
          %710 = vmatpush.msra.mxu0 0.0
          %711 = vmatpush.msra.mxu0 0.0
          %712 = vmatpush.msra.mxu0 0.0
          %713 = vmatpush.msra.mxu0 0.0
          %714 = vmatpush.msra.mxu0 0.0
          %715 = vmatpush.msra.mxu0 0.0
          %716 = vmatpush.msra.mxu0 0.0
          %717 = vmatpush.msra.mxu0 0.0
          %718 = vmatpush.msra.mxu0 %v672
          %719 = vmatpush.msra.mxu0 %v670
          %720 = vmatmul.f32.gmra.mxu0 %v681
          %v721 = vpop.f32.mrf.mxu0
          %v722 = vadd.f32 %v676, %v721
          %723 = vmatmul.f32.gmra.mxu0 %v684
          %v724 = vpop.f32.mrf.mxu0
          %v725 = vadd.f32 %v676, %v724
          %726 = vmatmul.f32.gmra.mxu0 %v687
          %v727 = vpop.f32.mrf.mxu0
          %v728 = vadd.f32 %v676, %v727
          %729 = vmatmul.f32.gmra.mxu0 %v690
          %v730 = vpop.f32.mrf.mxu0
          %v731 = vadd.f32 %v676, %v730
          %732 = vmatmul.f32.gmra.mxu0 %v693
          %v733 = vpop.f32.mrf.mxu0
          %v734 = vadd.f32 %v676, %v733
          %735 = vmatmul.f32.gmra.mxu0 %v696
          %v736 = vpop.f32.mrf.mxu0
          %v737 = vadd.f32 %v676, %v736
          %738 = vmatmul.f32.gmra.mxu0 %v699
          %v739 = vpop.f32.mrf.mxu0
          %v740 = vadd.f32 %v676, %v739
          %741 = vmatmul.f32.gmra.mxu0 %v702
          %v742 = vpop.f32.mrf.mxu0
          %v743 = vadd.f32 %v676, %v742
          %744 = vdwg.mxu0
          %745 = vmatpush.msra.mxu0 0.0
          %746 = vmatpush.msra.mxu0 0.0
          %747 = vmatpush.msra.mxu0 0.0
          %748 = vmatpush.msra.mxu0 0.0
          %749 = vmatpush.msra.mxu0 0.0
          %750 = vmatpush.msra.mxu0 0.0
          %751 = vmatpush.msra.mxu0 0.0
          %752 = vmatpush.msra.mxu0 0.0
          %753 = vmatpush.msra.mxu0 0.0
          %754 = vmatpush.msra.mxu0 0.0
          %755 = vmatpush.msra.mxu0 0.0
          %756 = vmatpush.msra.mxu0 0.0
          %757 = vmatpush.msra.mxu0 0.0
          %758 = vmatpush.msra.mxu0 0.0
          %759 = vmatpush.msra.mxu0 %v673
          %760 = vmatpush.msra.mxu0 %v671
          %761 = vmatmul.f32.gmra.mxu0 %v681
          %v762 = vpop.f32.mrf.mxu0
          %v763 = vadd.f32 %v677, %v762
          %764 = vmatmul.f32.gmra.mxu0 %v684
          %v765 = vpop.f32.mrf.mxu0
          %v766 = vadd.f32 %v677, %v765
          %767 = vmatmul.f32.gmra.mxu0 %v687
          %v768 = vpop.f32.mrf.mxu0
          %v769 = vadd.f32 %v677, %v768
          %770 = vmatmul.f32.gmra.mxu0 %v690
          %v771 = vpop.f32.mrf.mxu0
          %v772 = vadd.f32 %v677, %v771
          %773 = vmatmul.f32.gmra.mxu0 %v693
          %v774 = vpop.f32.mrf.mxu0
          %v775 = vadd.f32 %v677, %v774
          %776 = vmatmul.f32.gmra.mxu0 %v696
          %v777 = vpop.f32.mrf.mxu0
          %v778 = vadd.f32 %v677, %v777
          %779 = vmatmul.f32.gmra.mxu0 %v699
          %v780 = vpop.f32.mrf.mxu0
          %v781 = vadd.f32 %v677, %v780
          %782 = vmatmul.f32.gmra.mxu0 %v702
          %v783 = vpop.f32.mrf.mxu0
          %v784 = vadd.f32 %v677, %v783
          %785 = vdwg.mxu0
          %v786 = vld [vmem:[%s412] sm:$0xff]
          %v787 = vld [vmem:[%s412 + $0x8] sm:$0xff]
          %v788 = vld [vmem:[%s412 + $0x10] sm:$0xff]
          %v789 = vld [vmem:[%s412 + $0x18] sm:$0xff]
          %v790 = vld [vmem:[%s412 + $0x20] sm:$0xff]
          %v791 = vld [vmem:[%s412 + $0x28] sm:$0xff]
          %v792 = vld [vmem:[%s412 + $0x30] sm:$0xff]
          %v793 = vld [vmem:[%s412 + $0x38] sm:$0xff]
          %v794 = vld [vmem:[%s430] sm:$0xff]
          %v795 = vld [vmem:[%s430 + $0x8] sm:$0xff]
          %v796 = vld [vmem:[%s430 + $0x10] sm:$0xff]
          %v797 = vld [vmem:[%s430 + $0x18] sm:$0xff]
          %v798 = vld [vmem:[%s430 + $0x20] sm:$0xff]
          %v799 = vld [vmem:[%s430 + $0x28] sm:$0xff]
          %v800 = vld [vmem:[%s430 + $0x30] sm:$0xff]
          %v801 = vld [vmem:[%s430 + $0x38] sm:$0xff]
          %803 = vset.pattern.permute.xlu0 0
          %804 = vperm.xlu0 %803, %v794
          %v805 = vpop.permute.xlu0 %804
          %808 = vset.pattern.permute.xlu0 0
          %809 = vperm.xlu0 %808, %v795
          %v810 = vpop.permute.xlu0 %809
          %813 = vset.pattern.permute.xlu0 0
          %814 = vperm.xlu0 %813, %v796
          %v815 = vpop.permute.xlu0 %814
          %818 = vset.pattern.permute.xlu0 0
          %819 = vperm.xlu0 %818, %v797
          %v820 = vpop.permute.xlu0 %819
          %823 = vset.pattern.permute.xlu0 0
          %824 = vperm.xlu0 %823, %v798
          %v825 = vpop.permute.xlu0 %824
          %828 = vset.pattern.permute.xlu0 0
          %829 = vperm.xlu0 %828, %v799
          %v830 = vpop.permute.xlu0 %829
          %833 = vset.pattern.permute.xlu0 0
          %834 = vperm.xlu0 %833, %v800
          %v835 = vpop.permute.xlu0 %834
          %838 = vset.pattern.permute.xlu0 0
          %839 = vperm.xlu0 %838, %v801
          %v840 = vpop.permute.xlu0 %839
          %v842 = vmul.f32 %v805, %v722
          %v843 = vmul.f32 %v810, %v725
          %v844 = vmul.f32 %v815, %v728
          %v845 = vmul.f32 %v820, %v731
          %v846 = vmul.f32 %v825, %v734
          %v847 = vmul.f32 %v830, %v737
          %v848 = vmul.f32 %v835, %v740
          %v849 = vmul.f32 %v840, %v743
          %v850 = vadd.f32 %v842, %v763
          %v851 = vadd.f32 %v843, %v766
          %v852 = vadd.f32 %v844, %v769
          %v853 = vadd.f32 %v845, %v772
          %v854 = vadd.f32 %v846, %v775
          %v855 = vadd.f32 %v847, %v778
          %v856 = vadd.f32 %v848, %v781
          %v857 = vadd.f32 %v849, %v784
          %v858 = vadd.f32 %v786, %v850
          %v859 = vadd.f32 %v787, %v851
          %v860 = vadd.f32 %v788, %v852
          %v861 = vadd.f32 %v789, %v853
          %v862 = vadd.f32 %v790, %v854
          %v863 = vadd.f32 %v791, %v855
          %v864 = vadd.f32 %v792, %v856
          %v865 = vadd.f32 %v793, %v857
          %866 = vst [vmem:[%s412] sm:$0xff] %v858
          %867 = vst [vmem:[%s412 + $0x8] sm:$0xff] %v859
          %868 = vst [vmem:[%s412 + $0x10] sm:$0xff] %v860
          %869 = vst [vmem:[%s412 + $0x18] sm:$0xff] %v861
          %870 = vst [vmem:[%s412 + $0x20] sm:$0xff] %v862
          %871 = vst [vmem:[%s412 + $0x28] sm:$0xff] %v863
          %872 = vst [vmem:[%s412 + $0x30] sm:$0xff] %v864
          %873 = vst [vmem:[%s412 + $0x38] sm:$0xff] %v865
        $region97: #{tpu_custom_call.1} parent=84 // pred_fallthru
          _
        %s874 = sand.u32 %s210, 1
        %s875 = scalar_lea.sflag [#allocation4], %s874
        %s876 = sand.u32 %s210, 1
        %s877 = smul.addr %s876, 64
        %s878 = scalar_lea.vmem [#allocation3], %s877
        // Predicated region
        $region98: #{tpu_custom_call.1} parent=84 // pred_check
          %p879 = pneg %p220
        $region99: #{tpu_custom_call.1} parent=84 // pred_check_branch
          %881 = sbr.rel (%p879) target = $region101
        $region100: #{tpu_custom_call.1} parent=84 // pred_region
          %s882 = smul.u32 8, %s25
          %884 = vsyncadd %s875, 0
          %s885 = smul.addr %s882, 8
          %s886 = scalar_lea.hbm %s7, %s885
          %s887 = sshll.u32 %s878, 4
          %s888 = int_to_ptr.vmem [resolvable:$true] %s887
          %s889 = sshll.u32 %s886, 4
          %s890 = int_to_ptr.hbm [resolvable:$true] %s889
          %895 = dma.vmem_to_hbm [thread:$0]  %s888, 1024, %s890, %s875, 128, 128, 8
        $region101: #{tpu_custom_call.1} parent=84 // pred_fallthru
          _
      $region85: #{tpu_custom_call.1} parent=5 // pred_fallthru
        _
      %p896 = scmp.le.s32.totalorder 2, %s16
      // Predicated region
      $region102: #{tpu_custom_call.1} parent=5 // pred_check
        %p897 = pneg %p896
      $region103: #{tpu_custom_call.1} parent=5 // pred_check_branch
        %899 = sbr.rel (%p897) target = $region105
      $region104: #{tpu_custom_call.1} parent=5 // pred_region
        %s900 = ssub.s32 %s16, 2
        // Predicated region
        $region106: #{tpu_custom_call.1} parent=104 // pred_check
          %p901 = pneg %p226
        $region107: #{tpu_custom_call.1} parent=104 // pred_check_branch
          %903 = sbr.rel (%p901) target = $region109
        $region108: #{tpu_custom_call.1} parent=104 // pred_region
          %s904 = sand.u32 %s211, 1
          %s905 = scalar_lea.sflag [#allocation4], %s904
          %s906 = sand.u32 %s211, 1
          %s907 = smul.addr %s906, 64
          %s908 = scalar_lea.vmem [#allocation3], %s907
          %910 = dma.done %s905, 1024
        $region109: #{tpu_custom_call.1} parent=104 // pred_fallthru
          _
      $region105: #{tpu_custom_call.1} parent=5 // pred_fallthru
        _
    $region6: #{tpu_custom_call.1} parent=1 // loop_footer
      %s20 = sadd.s32 1, %s16
    $region7: #{tpu_custom_call.1} parent=1 // loop_footer_branch
      %15 = sbr.rel target = $region3
    $region8: #{tpu_custom_call.1} parent=1 // loop_exit
      _
    %911 = vsyncpa [#allocation4], 1
    %s912 = scalar_lea.sflag [#allocation4], 1
    %913 = vsyncpa %s912, 1

</llo_original>
